<compile_context>
chip_gen: v6e
topology: v6e:2x2x1
jax: 0.10.0
libtpu: 0.0.40
codegen_flags: <defaults>
</compile_context>

<pallas_src>
import functools
import math
from dataclasses import dataclass
from typing import Optional

import jax
import jax.numpy as jnp
from jax import lax
from jax.experimental import pallas as pl
from jax.experimental.pallas import tpu as pltpu


# =============================================================================
# Config (mirrors the Llama4TextConfig fields used by Llama4TextAttention)
# =============================================================================
@dataclass
class Llama4Config:
    hidden_size: int = 512
    num_attention_heads: int = 4
    num_key_value_heads: int = 2
    head_dim: int = 128
    rope_theta: float = 10000.0
    rope_scaling: Optional[dict] = None
    rms_norm_eps: float = 1e-6
    use_qk_norm: bool = True
    attn_temperature_tuning: bool = True
    attn_scale: float = 0.1
    floor_scale: float = 4.0        # real Llama4 uses 8192; small so demo exercises it
    attention_dropout: float = 0.0
    attention_bias: bool = False
    no_rope_layers: tuple = (1, 0)  # layer 0: RoPE layer, layer 1: no-RoPE layer


# =============================================================================
# Rotary-embedding parameter init (host-side glue, plain JAX)
# =============================================================================
def _rope_init(cfg):
    """inv_freq (head_dim//2,) and attention_scaling. Supports llama3-style scaling."""
    exponents = jnp.arange(0, cfg.head_dim, 2, dtype=jnp.float32) / float(cfg.head_dim)
    inv_freq = 1.0 / (cfg.rope_theta ** exponents)
    attention_scaling = 1.0
    rs = cfg.rope_scaling
    if rs is not None and rs.get("rope_type", "default") == "llama3":
        factor = rs["factor"]
        low_f = rs["low_freq_factor"]
        high_f = rs["high_freq_factor"]
        old_len = rs["original_max_position_embeddings"]
        low_wl = old_len / low_f
        high_wl = old_len / high_f
        wavelen = 2.0 * math.pi / inv_freq
        inv_llama = jnp.where(wavelen > low_wl, inv_freq / factor, inv_freq)
        smooth = (old_len / wavelen - low_f) / (high_f - low_f)
        smoothed = (1.0 - smooth) / factor * inv_freq + smooth * inv_freq
        is_medium = (wavelen <= low_wl) & (wavelen >= high_wl)
        inv_freq = jnp.where(is_medium, smoothed, inv_llama)
    return inv_freq, attention_scaling


def _fit_tile(dim, preferred):
    """Largest tile <= preferred that evenly divides `dim` (demo dims are powers of 2)."""
    t = min(dim, preferred)
    while t > 1 and dim % t != 0:
        t //= 2
    return t if dim % t == 0 else dim


# =============================================================================
# Kernel 1: tiled matmul (q/k/v/o projections)
# =============================================================================
def _matmul_kernel(x_ref, w_ref, o_ref, acc_ref):
    @pl.when(pl.program_id(2) == 0)
    def _init():
        acc_ref[...] = jnp.zeros(acc_ref.shape, acc_ref.dtype)

    acc_ref[...] += jnp.dot(x_ref[...], w_ref[...],
                            preferred_element_type=jnp.float32)

    @pl.when(pl.program_id(2) == pl.num_programs(2) - 1)
    def _store():
        o_ref[...] = acc_ref[...].astype(o_ref.dtype)


def _linear(x, w, *, tm=128, tn=256, tk=512):
    M, K = x.shape
    Kw, N = w.shape
    assert K == Kw
    tm, tn, tk = _fit_tile(M, tm), _fit_tile(N, tn), _fit_tile(K, tk)
    grid = (M // tm, N // tn, K // tk)
    return pl.pallas_call(
        _matmul_kernel,
        out_shape=jax.ShapeDtypeStruct((M, N), x.dtype),
        grid_spec=pltpu.PrefetchScalarGridSpec(
            num_scalar_prefetch=0,
            grid=grid,
            in_specs=[
                pl.BlockSpec((tm, tk), lambda i, j, k: (i, k)),
                pl.BlockSpec((tk, tn), lambda i, j, k: (k, j)),
            ],
            out_specs=pl.BlockSpec((tm, tn), lambda i, j, k: (i, j)),
            scratch_shapes=[pltpu.VMEM((tm, tn), jnp.float32)],
        ),
        compiler_params=pltpu.CompilerParams(
            dimension_semantics=("parallel", "parallel", "arbitrary")),
        cost_estimate=pl.CostEstimate(
            flops=2 * M * N * K, transcendentals=0,
            bytes_accessed=4 * (M * K + K * N + M * N)),
    )(x, w)


# =============================================================================
# Kernel 2: fused RoPE (interleaved pairs) + optional per-head L2 QK-norm
# =============================================================================
def _pair_swap_matrix(hd, dtype):
    """Permutation matrix swapping adjacent (even, odd) lane pairs (runs on MXU)."""
    a = lax.broadcasted_iota(jnp.int32, (hd, hd), 0)
    b = lax.broadcasted_iota(jnp.int32, (hd, hd), 1)
    partner = a + 1 - 2 * (a % 2)          # 2i <-> 2i+1
    return (b == partner).astype(dtype)


def _head_segment_matrix(hd, dh, dtype):
    """Block-diagonal head mask: per-head sums as one MXU matmul (no reshapes)."""
    a = lax.broadcasted_iota(jnp.int32, (hd, hd), 0)
    b = lax.broadcasted_iota(jnp.int32, (hd, hd), 1)
    return ((a // dh) == (b // dh)).astype(dtype)


def _rotate_interleaved(x, pos, inv_row, scaling):
    """apply_rotary_emb on a lane-dense (rows, num_heads*head_dim) block.

    out[2i]   = x[2i]*cos - x[2i+1]*sin
    out[2i+1] = x[2i]*sin + x[2i+1]*cos     (times attention_scaling)
    """
    hd = x.shape[-1]
    angle = pos * inv_row                   # (rows, hd); inv_row repeats freq per pair
    cos = jnp.cos(angle)
    sin = jnp.sin(angle)
    if scaling != 1.0:                      # static skip when scaling == 1.0
        cos = cos * scaling
        sin = sin * scaling
    lane = lax.broadcasted_iota(jnp.int32, (1, hd), 1)
    sin_signed = jnp.where(lane % 2 == 0, -sin, sin)
    swapped = jnp.dot(x, _pair_swap_matrix(hd, x.dtype),
                      preferred_element_type=jnp.float32).astype(x.dtype)
    return x * cos + swapped * sin_signed


def _l2_norm_per_head(x, dh, eps):
    """Llama4TextL2Norm over each head_dim group of a (rows, H*head_dim) block."""
    hd = x.shape[-1]
    seg = _head_segment_matrix(hd, dh, x.dtype)
    ssq = jnp.dot(x * x, seg, preferred_element_type=jnp.float32)
    return x * lax.rsqrt(ssq * (1.0 / dh) + eps)


def _rope_qknorm_kernel(pos_ref, invq_ref, invk_ref, q_ref, k_ref, qo_ref, ko_ref,
                        *, head_dim, eps, attention_scaling, use_qk_norm):
    pos = pos_ref[...]                      # (rows, 1) f32 token positions
    q = _rotate_interleaved(q_ref[...], pos, invq_ref[...], attention_scaling)
    k = _rotate_interleaved(k_ref[...], pos, invk_ref[...], attention_scaling)
    if use_qk_norm:
        q = _l2_norm_per_head(q, head_dim, eps)
        k = _l2_norm_per_head(k, head_dim, eps)
    qo_ref[...] = q.astype(qo_ref.dtype)
    ko_ref[...] = k.astype(ko_ref.dtype)


def _apply_rope_and_qknorm(q2, k2, pos, invq_row, invk_row, *, head_dim, eps,
                           attention_scaling, use_qk_norm, block_rows=256):
    M, HDq = q2.shape
    _, HDk = k2.shape
    tm = _fit_tile(M, block_rows)           # token-tiled: VMEM bounded for any seq len
    kernel = functools.partial(_rope_qknorm_kernel, head_dim=head_dim, eps=eps,
                               attention_scaling=attention_scaling,
                               use_qk_norm=use_qk_norm)
    return pl.pallas_call(
        kernel,
        out_shape=(jax.ShapeDtypeStruct((M, HDq), q2.dtype),
                   jax.ShapeDtypeStruct((M, HDk), k2.dtype)),
        grid_spec=pltpu.PrefetchScalarGridSpec(
            num_scalar_prefetch=0,
            grid=(M // tm,),
            in_specs=[
                pl.BlockSpec((tm, 1), lambda i: (i, 0)),     # positions (per token)
                pl.BlockSpec((1, HDq), lambda i: (0, 0)),    # inv_freq tiled for q heads
                pl.BlockSpec((1, HDk), lambda i: (0, 0)),    # inv_freq tiled for kv heads
                pl.BlockSpec((tm, HDq), lambda i: (i, 0)),
                pl.BlockSpec((tm, HDk), lambda i: (i, 0)),
            ],
            out_specs=[
                pl.BlockSpec((tm, HDq), lambda i: (i, 0)),   # lane-dense outputs
                pl.BlockSpec((tm, HDk), lambda i: (i, 0)),
            ],
        ),
        compiler_params=pltpu.CompilerParams(dimension_semantics=("parallel",)),
    )(pos, invq_row, invk_row, q2, k2)


# =============================================================================
# Kernel 3: attn temperature tuning for no-RoPE layers
# =============================================================================
def _temp_scale_kernel(pos_ref, q_ref, qo_ref, *, attn_scale, floor_scale):
    pos = pos_ref[...]                      # cache_position == position_ids (no cache)
    scales = jnp.log(jnp.floor((pos + 1.0) / floor_scale) + 1.0) * attn_scale + 1.0
    qo_ref[...] = (q_ref[...] * scales).astype(qo_ref.dtype)


def _apply_temperature_scaling(q2, pos, *, attn_scale, floor_scale, block_rows=256):
    M, HDq = q2.shape
    tm = _fit_tile(M, block_rows)
    kernel = functools.partial(_temp_scale_kernel, attn_scale=attn_scale,
                               floor_scale=floor_scale)
    return pl.pallas_call(
        kernel,
        out_shape=jax.ShapeDtypeStruct((M, HDq), q2.dtype),
        grid_spec=pltpu.PrefetchScalarGridSpec(
            num_scalar_prefetch=0,
            grid=(M // tm,),
            in_specs=[
                pl.BlockSpec((tm, 1), lambda i: (i, 0)),
                pl.BlockSpec((tm, HDq), lambda i: (i, 0)),
            ],
            out_specs=pl.BlockSpec((tm, HDq), lambda i: (i, 0)),
        ),
        compiler_params=pltpu.CompilerParams(dimension_semantics=("parallel",)),
    )(pos, q2)


# =============================================================================
# Kernel 4: causal GQA flash attention (online softmax)
# =============================================================================
def _flash_attn_kernel(q_ref, k_ref, v_ref, o_ref, m_sc, l_sc, acc_sc, *,
                       sm_scale, block_q, block_k):
    qi = pl.program_id(2)
    ki = pl.program_id(3)

    @pl.when(ki == 0)
    def _init():
        m_sc[...] = jnp.full(m_sc.shape, -jnp.inf, m_sc.dtype)
        l_sc[...] = jnp.zeros(l_sc.shape, l_sc.dtype)
        acc_sc[...] = jnp.zeros(acc_sc.shape, acc_sc.dtype)

    # Causal skip: this KV tile contributes only if its first key position is
    # visible to the last query row of this Q tile.
    @pl.when(ki * block_k <= qi * block_q + (block_q - 1))
    def _compute():
        q = q_ref[...]                      # (block_q, head_dim)
        k = k_ref[...]                      # (block_k, head_dim)
        v = v_ref[...]
        s = lax.dot_general(q, k, (((1,), (1,)), ((), ())),
                            preferred_element_type=jnp.float32) * sm_scale
        q_pos = qi * block_q + lax.broadcasted_iota(jnp.int32, s.shape, 0)
        k_pos = ki * block_k + lax.broadcasted_iota(jnp.int32, s.shape, 1)
        causal = k_pos <= q_pos
        s = jnp.where(causal, s, -1e30)

        m_prev = m_sc[...]
        m_new = jnp.maximum(m_prev, jnp.max(s, axis=-1, keepdims=True))
        alpha = jnp.exp(m_prev - m_new)
        p = jnp.exp(s - m_new) * causal.astype(jnp.float32)
        l_sc[...] = alpha * l_sc[...] + jnp.sum(p, axis=-1, keepdims=True)
        acc_sc[...] = alpha * acc_sc[...] + jnp.dot(
            p, v, preferred_element_type=jnp.float32)
        m_sc[...] = m_new

    @pl.when(ki == pl.num_programs(3) - 1)
    def _finalize():
        # pl.reciprocal(l_sc[...], approx=True) would push this to the EUP;
        # exact divide keeps the numerics check tight.
        o_ref[...] = (acc_sc[...] / l_sc[...]).astype(o_ref.dtype)


def _flash_attention(q4, k4, v4, *, sm_scale, block_q=128, block_k=128):
    B, Hq, S, Dh = q4.shape
    _, Hkv, Sk, _ = k4.shape
    assert S == Sk
    G = Hq // Hkv
    block_q = _fit_tile(S, block_q)
    block_k = block_q                       # equal tiles keep the causal skip exact
    grid = (B, Hq, S // block_q, S // block_k)

    kernel = functools.partial(_flash_attn_kernel, sm_scale=sm_scale,
                               block_q=block_q, block_k=block_k)
    return pl.pallas_call(
        kernel,
        out_shape=jax.ShapeDtypeStruct((B, Hq, S, Dh), q4.dtype),
        grid_spec=pltpu.PrefetchScalarGridSpec(
            num_scalar_prefetch=0,
            grid=grid,
            in_specs=[
                pl.BlockSpec((None, None, block_q, Dh),
                             lambda b, h, qi, ki: (b, h, qi, 0)),
                # GQA: query head h reads KV head h // G (no repeat_kv in HBM)
                pl.BlockSpec((None, None, block_k, Dh),
                             lambda b, h, qi, ki: (b, h // G, ki, 0)),
                pl.BlockSpec((None, None, block_k, Dh),
                             lambda b, h, qi, ki: (b, h // G, ki, 0)),
            ],
            out_specs=pl.BlockSpec((None, None, block_q, Dh),
                                   lambda b, h, qi, ki: (b, h, qi, 0)),
            scratch_shapes=[
                pltpu.VMEM((block_q, 1), jnp.float32),   # running max
                pltpu.VMEM((block_q, 1), jnp.float32),   # running denom
                pltpu.VMEM((block_q, Dh), jnp.float32),  # output accumulator
            ],
        ),
        compiler_params=pltpu.CompilerParams(
            dimension_semantics=("parallel", "parallel", "parallel", "arbitrary")),
        cost_estimate=pl.CostEstimate(
            flops=4 * B * Hq * S * S * Dh,
            transcendentals=B * Hq * S * S,
            bytes_accessed=4 * (q4.size + k4.size + v4.size + q4.size)),
    )(q4, k4, v4)


# =============================================================================
# Full Llama4TextAttention forward (no KV cache, eval mode, causal)
# =============================================================================
def llama4_text_attention_forward(hidden_states, position_ids, params, cfg, layer_idx):
    B, S, H = hidden_states.shape
    Dh = cfg.head_dim
    Hq = cfg.num_attention_heads
    Hkv = cfg.num_key_value_heads
    assert Hq % Hkv == 0
    use_rope = bool(cfg.no_rope_layers[layer_idx])
    M = B * S

    x2 = hidden_states.reshape(M, H)

    # --- 1. Q/K/V projections ---------------------------------------------------
    # TODO(synk): attention_bias=True (bias add) not wired up; Llama4 uses bias=False.
    q2 = _linear(x2, params["wq"])          # (M, Hq*Dh)
    k2 = _linear(x2, params["wk"])          # (M, Hkv*Dh)
    v2 = _linear(x2, params["wv"])          # (M, Hkv*Dh)

    # positions as f32 (exact for positions < 2**24); without a KV cache,
    # cache_position == position_ids, used by both RoPE and temperature tuning.
    pos = position_ids.astype(jnp.float32).reshape(M, 1)

    # --- 2. RoPE + optional QK-norm, or temperature tuning -----------------------
    if use_rope:
        inv_freq, attention_scaling = _rope_init(cfg)
        inv_pair = jnp.repeat(inv_freq, 2)                         # (Dh,)
        invq_row = jnp.tile(inv_pair, Hq).reshape(1, Hq * Dh)
        invk_row = jnp.tile(inv_pair, Hkv).reshape(1, Hkv * Dh)
        q2, k2 = _apply_rope_and_qknorm(
            q2, k2, pos, invq_row, invk_row, head_dim=Dh, eps=cfg.rms_norm_eps,
            attention_scaling=float(attention_scaling),
            use_qk_norm=cfg.use_qk_norm)
    elif cfg.attn_temperature_tuning:
        q2 = _apply_temperature_scaling(
            q2, pos, attn_scale=cfg.attn_scale, floor_scale=cfg.floor_scale)

    # --- 3. causal GQA flash attention -------------------------------------------
    # TODO(synk): past_key_value cache update and externally supplied attention_mask
    # are not implemented; the causal mask is generated inside the kernel.
    q4 = q2.reshape(B, S, Hq, Dh).transpose(0, 2, 1, 3)
    k4 = k2.reshape(B, S, Hkv, Dh).transpose(0, 2, 1, 3)
    v4 = v2.reshape(B, S, Hkv, Dh).transpose(0, 2, 1, 3)
    o4 = _flash_attention(q4, k4, v4, sm_scale=Dh ** -0.5)

    # --- 4. output projection -----------------------------------------------------
    o2 = o4.transpose(0, 2, 1, 3).reshape(M, Hq * Dh)
    out = _linear(o2, params["wo"]).reshape(B, S, H)

    # attn_weights are not materialized by the flash kernel (None, as with
    # non-eager attention implementations). Dropout omitted (eval mode).
    return out, None


# =============================================================================
# Pure-JAX reference (mirrors the PyTorch eager path)
# =============================================================================
def _reference_forward(x, position_ids, params, cfg, layer_idx):
    B, S, H = x.shape
    Dh, Hq, Hkv = cfg.head_dim, cfg.num_attention_heads, cfg.num_key_value_heads
    G = Hq // Hkv
    hp = lax.Precision.HIGHEST

    q = jnp.einsum("bsh,hn->bsn", x, params["wq"], precision=hp).reshape(B, S, Hq, Dh)
    k = jnp.einsum("bsh,hn->bsn", x, params["wk"], precision=hp).reshape(B, S, Hkv, Dh)
    v = jnp.einsum("bsh,hn->bsn", x, params["wv"], precision=hp).reshape(B, S, Hkv, Dh)

    use_rope = bool(cfg.no_rope_layers[layer_idx])
    inv_freq, att_scaling = _rope_init(cfg)
    posf = position_ids.astype(jnp.float32)

    if use_rope:
        freqs = posf[:, :, None] * inv_freq[None, None, :]
        cos = jnp.cos(freqs) * att_scaling
        sin = jnp.sin(freqs) * att_scaling

        def rot(t):
            te, to = t[..., 0::2], t[..., 1::2]
            re = te * cos[:, :, None, :] - to * sin[:, :, None, :]
            ro = te * sin[:, :, None, :] + to * cos[:, :, None, :]
            return jnp.stack([re, ro], axis=-1).reshape(t.shape)

        q, k = rot(q), rot(k)
        if cfg.use_qk_norm:
            def l2n(t):
                return t * lax.rsqrt(jnp.mean(t * t, axis=-1, keepdims=True)
                                     + cfg.rms_norm_eps)
            q, k = l2n(q), l2n(k)
    elif cfg.attn_temperature_tuning:
        scales = (jnp.log(jnp.floor((posf + 1.0) / cfg.floor_scale) + 1.0)
                  * cfg.attn_scale + 1.0)
        q = q * scales[:, :, None, None]

    qt = q.transpose(0, 2, 1, 3)
    kt = jnp.repeat(k.transpose(0, 2, 1, 3), G, axis=1)
    vt = jnp.repeat(v.transpose(0, 2, 1, 3), G, axis=1)
    scores = jnp.einsum("bhqd,bhkd->bhqk", qt, kt, precision=hp) * (Dh ** -0.5)
    causal = jnp.tril(jnp.ones((S, S), dtype=bool))
    scores = jnp.where(causal[None, None], scores, -jnp.inf)
    w = jax.nn.softmax(scores, axis=-1)
    o = jnp.einsum("bhqk,bhkd->bhqd", w, vt, precision=hp)
    o = o.transpose(0, 2, 1, 3).reshape(B, S, Hq * Dh)
    return jnp.einsum("bsn,nh->bsh", o, params["wo"], precision=hp)


# =============================================================================
# Demo / self-check
# =============================================================================
if __name__ == "__main__":
    cfg = Llama4Config(
        rope_scaling={"rope_type": "llama3", "factor": 8.0, "low_freq_factor": 1.0,
                      "high_freq_factor": 4.0,
                      "original_max_position_embeddings": 8192},
    )
    B, S = 2, 16
    H, Hq, Hkv, Dh = (cfg.hidden_size, cfg.num_attention_heads,
                      cfg.num_key_value_heads, cfg.head_dim)

    key = jax.random.PRNGKey(0)
    kx, kq, kk, kv, ko = jax.random.split(key, 5)

    def _bf16_representable(a):
        # Quantize test inputs to bf16-representable f32 so the comparison is
        # insensitive to MXU f32 pass decomposition details.
        return a.astype(jnp.bfloat16).astype(jnp.float32)

    x = _bf16_representable(jax.random.normal(kx, (B, S, H), dtype=jnp.float32))
    params = {
        "wq": _bf16_representable(
            jax.random.normal(kq, (H, Hq * Dh), jnp.float32) * H ** -0.5),
        "wk": _bf16_representable(
            jax.random.normal(kk, (H, Hkv * Dh), jnp.float32) * H ** -0.5),
        "wv": _bf16_representable(
            jax.random.normal(kv, (H, Hkv * Dh), jnp.float32) * H ** -0.5),
        "wo": _bf16_representable(
            jax.random.normal(ko, (Hq * Dh, H), jnp.float32) * (Hq * Dh) ** -0.5),
    }
    # no-cache forward: position_ids == cache_position (arbitrary start offset)
    position_ids = jnp.broadcast_to(jnp.arange(S, dtype=jnp.int32) + 3, (B, S))

    # layer 0: RoPE + QK L2-norm path; layer 1: no-RoPE + attn temperature tuning
    for layer_idx in (0, 1):
        out, attn_w = llama4_text_attention_forward(
            x, position_ids, params, cfg, layer_idx)
        out = jax.block_until_ready(out)
        ref = _reference_forward(x, position_ids, params, cfg, layer_idx)
        assert out.shape == (B, S, H) and out.dtype == jnp.float32
        assert attn_w is None
        # Tolerance covers MXU f32 matmul pass differences vs the XLA HIGHEST
        # reference; structural bugs produce errors orders of magnitude larger.
        assert jnp.allclose(out, ref, atol=2e-2, rtol=2e-2), (
            f"layer {layer_idx} mismatch, max abs err "
            f"{float(jnp.max(jnp.abs(out - ref)))}")

    print("KERNEL_OK")
</pallas_src>

<mosaic_0001>
module attributes {stable_mosaic.version = 11 : i64} {
  func.func @_matmul_kernel(%arg0: i32, %arg1: i32, %arg2: i32, %arg3: memref<32x512xf32, #tpu.memory_space<vmem>>, %arg4: memref<512x256xf32, #tpu.memory_space<vmem>>, %arg5: memref<32x256xf32, #tpu.memory_space<vmem>>, %arg6: memref<32x256xf32, #tpu.memory_space<vmem>>) attributes {dimension_semantics = [#tpu.dimension_semantics<parallel>, #tpu.dimension_semantics<parallel>, #tpu.dimension_semantics<arbitrary>], iteration_bounds = array<i64: 1, 2, 1>, scalar_prefetch = 0 : i64, scratch_operands = 1 : i64, tpu.core_type = #tpu.core_type<tc>, window_params = [{transform_indices = @transform_0, window_bounds = array<i64: 32, 512>}, {transform_indices = @transform_1, window_bounds = array<i64: 512, 256>}, {transform_indices = @transform_2, window_bounds = array<i64: 32, 256>}]} {
    %c0_i32 = arith.constant 0 : i32
    %0 = arith.cmpi eq, %arg2, %c0_i32 : i32
    %1 = arith.extui %0 : i1 to i32
    %c0_i32_0 = arith.constant 0 : i32
    %2 = arith.cmpi ne, %1, %c0_i32_0 : i32
    scf.if %2 {
      %cst_10 = arith.constant 0.000000e+00 : f32
      %12 = vector.broadcast %cst_10 : f32 to vector<32x256xf32>
      %c0_11 = arith.constant 0 : index
      %c0_12 = arith.constant 0 : index
      %13 = vector.load %arg6[%c0_11, %c0_12] : memref<32x256xf32, #tpu.memory_space<vmem>>, vector<32x256xf32>
      tpu.vector_store %arg6[%c0_11, %c0_12], %12 {strides = array<i32>} : memref<32x256xf32, #tpu.memory_space<vmem>>, vector<32x256xf32>,
    } else {
    }
    %c0 = arith.constant 0 : index
    %c0_1 = arith.constant 0 : index
    %3 = vector.load %arg6[%c0, %c0_1] : memref<32x256xf32, #tpu.memory_space<vmem>>, vector<32x256xf32>
    %c0_2 = arith.constant 0 : index
    %c0_3 = arith.constant 0 : index
    %4 = vector.load %arg3[%c0_2, %c0_3] : memref<32x512xf32, #tpu.memory_space<vmem>>, vector<32x512xf32>
    %c0_4 = arith.constant 0 : index
    %c0_5 = arith.constant 0 : index
    %5 = vector.load %arg4[%c0_4, %c0_5] : memref<512x256xf32, #tpu.memory_space<vmem>>, vector<512x256xf32>
    %cst = arith.constant dense<0.000000e+00> : vector<32x256xf32>
    %6 = tpu.matmul %4, %5, %cst {dimension_numbers = #tpu.dot_dimension_numbers<[1], [0], [0], [1], [0, 0, 1, 1], [], []>} : vector<32x512xf32>, vector<512x256xf32>, vector<32x256xf32> -> vector<32x256xf32>
    %7 = arith.addf %3, %6 : vector<32x256xf32>
    %c0_6 = arith.constant 0 : index
    %c0_7 = arith.constant 0 : index
    %8 = vector.load %arg6[%c0_6, %c0_7] : memref<32x256xf32, #tpu.memory_space<vmem>>, vector<32x256xf32>
    tpu.vector_store %arg6[%c0_6, %c0_7], %7 {strides = array<i32>} : memref<32x256xf32, #tpu.memory_space<vmem>>, vector<32x256xf32>,
    %c0_i32_8 = arith.constant 0 : i32
    %9 = arith.cmpi eq, %arg2, %c0_i32_8 : i32
    %10 = arith.extui %9 : i1 to i32
    %c0_i32_9 = arith.constant 0 : i32
    %11 = arith.cmpi ne, %10, %c0_i32_9 : i32
    scf.if %11 {
      %c0_10 = arith.constant 0 : index
      %c0_11 = arith.constant 0 : index
      %12 = vector.load %arg6[%c0_10, %c0_11] : memref<32x256xf32, #tpu.memory_space<vmem>>, vector<32x256xf32>
      %c0_12 = arith.constant 0 : index
      %c0_13 = arith.constant 0 : index
      %13 = vector.load %arg5[%c0_12, %c0_13] : memref<32x256xf32, #tpu.memory_space<vmem>>, vector<32x256xf32>
      tpu.vector_store %arg5[%c0_12, %c0_13], %12 {strides = array<i32>} : memref<32x256xf32, #tpu.memory_space<vmem>>, vector<32x256xf32>,
    } else {
    }
    return
  }
  func.func @transform_0(%arg0: i32, %arg1: i32, %arg2: i32) -> (i32, i32) {
    %c0_i32 = arith.constant 0 : i32
    return %arg0, %arg2 : i32, i32
  }
  func.func @transform_1(%arg0: i32, %arg1: i32, %arg2: i32) -> (i32, i32) {
    %c0_i32 = arith.constant 0 : i32
    return %arg2, %arg1 : i32, i32
  }
  func.func @transform_2(%arg0: i32, %arg1: i32, %arg2: i32) -> (i32, i32) {
    %c0_i32 = arith.constant 0 : i32
    return %arg0, %arg1 : i32, i32
  }
}

</mosaic_0001>

<llo_original>
// kernel: tpu_custom_call.1
$region0: #{tpu_custom_call.1}
  #allocation0 [shape = 'u32[]', space=smem, size = 0x4, offset = 0x4, fixed_abs, tag = 'smem constant byte address 0x4 - core index']
  #allocation1 [shape = 'u32[144,128]{1,0:T(1,128)}', space=vmem, size = 0x12000, scoped, tag = 'internal scratch']
  #allocation2 [shape = 'f32[32,256]{1,0:T(8,128)}', space=vmem, size = 0x8000, scoped, tag = 'scratch operand']
  %s0 = inlined_call_operand.hbm [shape: f32[32,512], index: 0, kind: input, shape index: {}]
  %s1 = inlined_call_operand.hbm [shape: f32[512,512], index: 1, kind: input, shape index: {}]
  %s2 = inlined_call_operand.hbm [shape: f32[32,512], index: 2, kind: output, shape index: {}]
  %s3 = sld [smem:[#allocation0]]
  $region57: #{tpu_custom_call.1} parent=0
    _
  %s5 = ssub.s32 1, %s3
  %s6 = scalar_select 0, %s5, %s3
  $region1: #{tpu_custom_call.1} parent=0
    #allocation3 [shape = 'u8[65536]{0}', space=vmem, size = 0x10000, scoped, tag = 'input window, operand 0, single buffered']
    #allocation4 [shape = 's32[2]{0}', space=sflag, size = 0x8, scoped, tag = 'scoped memory for tpu_custom_call.1']
    #allocation5 [shape = 's32[2]{0}', space=sflag, size = 0x8, scoped, tag = 'scoped memory for tpu_custom_call.1']
    #allocation6 [shape = 'u8[1048576]{0}', space=vmem, size = 0x100000, scoped, tag = 'input window, operand 1']
    #allocation7 [shape = 's32[2]{0}', space=sflag, size = 0x8, scoped, tag = 'scoped memory for tpu_custom_call.1']
    #allocation8 [shape = 'u8[65536]{0}', space=vmem, size = 0x10000, scoped, tag = 'output window, operand 0']
    %7 = vsyncpa [#allocation4], 0
    %8 = vsyncpa [#allocation7], 0
    %s9 = scalar_lea.sflag [#allocation7], 1
    %10 = vsyncpa %s9, 0
    %11 = vsyncpa [#allocation5], 0
    %s12 = scalar_lea.sflag [#allocation5], 1
    %13 = vsyncpa %s12, 0
    loop: start=0, step=1, limit=4
    $region2: #{tpu_custom_call.1} parent=1 // loop_pre_header
      _
    $region3: #{tpu_custom_call.1} parent=1 // loop_header
      %s15 = sphi 0, %s19
      %p16 = scmp.ge.s32.totalorder %s15, 4
      %s22 = sphi 0, %s41
      %s23 = sphi 0, %s37
      %s24 = sphi 0, %s33
      %s25 = sphi 0, %s22
      %s26 = sphi 0, %s23
      %s27 = sphi 0, %s24
      %s28 = sphi 0, %s25
      %s29 = sphi 0, %s26
      %s30 = sphi 0, %s27
      %s46 = sphi 0, %s48
      %s49 = sphi 0, %s46
      %s50 = sphi 0, %s49
      %s66 = sphi 0, %s50
      %s74 = sphi 0, %s76
      %s77 = sphi 0, %s74
      %s78 = sphi 0, %s77
      %s94 = sphi 0, %s78
      %s102 = sphi 0, %s104
      %s105 = sphi 0, %s102
      %s106 = sphi 0, %s105
      %s122 = sphi 0, %s106
    $region4: #{tpu_custom_call.1} parent=1 // loop_header_branch
      %18 = sbr.rel (%p16) target = $region8
    $region5: #{tpu_custom_call.1} parent=1 // loop_body
      %s20 = ssub.s32 %s15, 1
      %s21 = ssub.s32 %s15, 2
      %s31 = sadd.s32 1, %s24
      %p32 = scmp.ge.s32.totalorder %s31, 1
      %s33 = scalar_select %p32, 0, %s31
      %s34 = sadd.s32 1, %s23
      %s35 = scalar_select %p32, %s34, %s23
      %p36 = scmp.ge.s32.totalorder %s35, 2
      %s37 = scalar_select %p36, 0, %s35
      %s38 = sadd.s32 1, %s22
      %s39 = scalar_select %p36, %s38, %s22
      %p40 = scmp.ge.s32.totalorder %s39, 1
      %s41 = scalar_select %p40, 0, %s39
      %s42 = ssub.s32 %s22, %s41
      %s43 = ssub.s32 %s24, %s33
      %s44 = sor.u32 %s42, %s43
      %p45 = scmp.eq.s32.totalorder %s44, 0
      %s47 = sadd.s32 %s46, 1
      %s48 = scalar_select %p45, %s46, %s47
      %p51 = pneg %p45
      %p52 = scmp.eq.s32.totalorder %s15, 1
      %p53 = por %p51, %p52
      %p54 = scmp.ne.s32.totalorder %s46, %s49
      %p55 = scmp.eq.s32.totalorder %s15, 0
      %p56 = por %p54, %p55
      %p57 = scmp.ne.s32.totalorder %s46, %s49
      %p58 = scmp.eq.s32.totalorder %s20, 1
      %p59 = por %p57, %p58
      %p60 = scmp.ne.s32.totalorder %s49, %s50
      %p61 = scmp.eq.s32.totalorder %s20, 0
      %p62 = por %p60, %p61
      %p63 = scmp.ne.s32.totalorder %s49, %s50
      %p64 = scmp.eq.s32.totalorder %s21, 1
      %p65 = por %p63, %p64
      %p67 = scmp.ne.s32.totalorder %s50, %s66
      %p68 = scmp.eq.s32.totalorder %s21, 0
      %p69 = por %p67, %p68
      %s70 = ssub.s32 %s24, %s33
      %s71 = ssub.s32 %s23, %s37
      %s72 = sor.u32 %s70, %s71
      %p73 = scmp.eq.s32.totalorder %s72, 0
      %s75 = sadd.s32 %s74, 1
      %s76 = scalar_select %p73, %s74, %s75
      %p79 = pneg %p73
      %p80 = scmp.eq.s32.totalorder %s15, 1
      %p81 = por %p79, %p80
      %p82 = scmp.ne.s32.totalorder %s74, %s77
      %p83 = scmp.eq.s32.totalorder %s15, 0
      %p84 = por %p82, %p83
      %p85 = scmp.ne.s32.totalorder %s74, %s77
      %p86 = scmp.eq.s32.totalorder %s20, 1
      %p87 = por %p85, %p86
      %p88 = scmp.ne.s32.totalorder %s77, %s78
      %p89 = scmp.eq.s32.totalorder %s20, 0
      %p90 = por %p88, %p89
      %p91 = scmp.ne.s32.totalorder %s77, %s78
      %p92 = scmp.eq.s32.totalorder %s21, 1
      %p93 = por %p91, %p92
      %p95 = scmp.ne.s32.totalorder %s78, %s94
      %p96 = scmp.eq.s32.totalorder %s21, 0
      %p97 = por %p95, %p96
      %s98 = ssub.s32 %s22, %s41
      %s99 = ssub.s32 %s23, %s37
      %s100 = sor.u32 %s98, %s99
      %p101 = scmp.eq.s32.totalorder %s100, 0
      %s103 = sadd.s32 %s102, 1
      %s104 = scalar_select %p101, %s102, %s103
      %p107 = pneg %p101
      %p108 = scmp.eq.s32.totalorder %s15, 1
      %p109 = por %p107, %p108
      %p110 = scmp.ne.s32.totalorder %s102, %s105
      %p111 = scmp.eq.s32.totalorder %s15, 0
      %p112 = por %p110, %p111
      %p113 = scmp.ne.s32.totalorder %s102, %s105
      %p114 = scmp.eq.s32.totalorder %s20, 1
      %p115 = por %p113, %p114
      %p116 = scmp.ne.s32.totalorder %s105, %s106
      %p117 = scmp.eq.s32.totalorder %s20, 0
      %p118 = por %p116, %p117
      %p119 = scmp.ne.s32.totalorder %s105, %s106
      %p120 = scmp.eq.s32.totalorder %s21, 1
      %p121 = por %p119, %p120
      %p123 = scmp.ne.s32.totalorder %s106, %s122
      %p124 = scmp.eq.s32.totalorder %s21, 0
      %p125 = por %p123, %p124
      %p126 = scmp.le.s32.totalorder 1, %s15
      %p127 = scmp.lt.s32.totalorder %s15, 3
      %p128 = pnand %p126, %p127
      %p129 = pneg %p128
      // Predicated region
      $region9: #{tpu_custom_call.1} parent=5 // pred_check
        _
      $region10: #{tpu_custom_call.1} parent=5 // pred_check_branch
        %131 = sbr.rel (%p128) target = $region12
      $region11: #{tpu_custom_call.1} parent=5 // pred_region
        %s132 = ssub.s32 %s15, 1
        // Predicated region
        $region13: #{tpu_custom_call.1} parent=11 // pred_check
          %p133 = pneg %p62
        $region14: #{tpu_custom_call.1} parent=11 // pred_check_branch
          %135 = sbr.rel (%p133) target = $region16
        $region15: #{tpu_custom_call.1} parent=11 // pred_region
          %s136 = smul.u32 4, %s25
          %s137 = smul.u32 4, %s27
          %s139 = ssub.s32 2048, 2048
          %140 = vsyncadd [#allocation4], %s139
          %s141 = smul.addr %s136, 4
          %s142 = sadd.s32 %s137, %s141
          %s143 = smul.addr %s142, 128
          %s144 = scalar_lea.hbm %s0, %s143
          %s145 = sshll.u32 [#allocation3], 4
          %s146 = int_to_ptr.vmem [resolvable:$true] %s145
          %151 = dma.hbm_to_vmem [thread:$0]  %s144, 2048, %s146, [#allocation4], 512, 512, 32
        $region16: #{tpu_custom_call.1} parent=11 // pred_fallthru
          _
      $region12: #{tpu_custom_call.1} parent=5 // pred_fallthru
        _
      %p152 = scmp.lt.s32.totalorder %s15, 2
      // Predicated region
      $region17: #{tpu_custom_call.1} parent=5 // pred_check
        %p153 = pneg %p152
      $region18: #{tpu_custom_call.1} parent=5 // pred_check_branch
        %155 = sbr.rel (%p153) target = $region20
      $region19: #{tpu_custom_call.1} parent=5 // pred_region
        // Predicated region
        $region21: #{tpu_custom_call.1} parent=19 // pred_check
          %p156 = pneg %p84
        $region22: #{tpu_custom_call.1} parent=19 // pred_check_branch
          %158 = sbr.rel (%p156) target = $region24
        $region23: #{tpu_custom_call.1} parent=19 // pred_region
          %s159 = sand.u32 %s74, 1
          %s160 = scalar_lea.sflag [#allocation7], %s159
          %s161 = sand.u32 %s74, 1
          %s162 = smul.addr %s161, 1024
          %s163 = scalar_lea.vmem [#allocation6], %s162
          %s164 = smul.u32 64, %s24
          %s165 = smul.u32 2, %s23
          %s167 = ssub.s32 16384, 16384
          %168 = vsyncadd %s160, %s167
          %s169 = smul.addr %s164, 4
          %s170 = sadd.s32 %s165, %s169
          %s171 = smul.addr %s170, 128
          %s172 = scalar_lea.hbm %s1, %s171
          %s173 = sshll.u32 %s163, 4
          %s174 = int_to_ptr.vmem [resolvable:$true] %s173
          %179 = dma.hbm_to_vmem [thread:$0]  %s172, 16384, %s174, %s160, 512, 256, 16
        $region24: #{tpu_custom_call.1} parent=19 // pred_fallthru
          _
      $region20: #{tpu_custom_call.1} parent=5 // pred_fallthru
        _
      %p180 = scmp.le.s32.totalorder 1, %s15
      %p181 = scmp.lt.s32.totalorder %s15, 3
      %p182 = pnand %p180, %p181
      %p183 = pneg %p182
      // Predicated region
      $region25: #{tpu_custom_call.1} parent=5 // pred_check
        _
      $region26: #{tpu_custom_call.1} parent=5 // pred_check_branch
        %185 = sbr.rel (%p182) target = $region28
      $region27: #{tpu_custom_call.1} parent=5 // pred_region
        %s186 = ssub.s32 %s15, 1
        // Predicated region
        $region29: #{tpu_custom_call.1} parent=27 // pred_check
          %p187 = pneg %p62
        $region30: #{tpu_custom_call.1} parent=27 // pred_check_branch
          %189 = sbr.rel (%p187) target = $region32
        $region31: #{tpu_custom_call.1} parent=27 // pred_region
          %190 = dma.done [#allocation4], 2048
        $region32: #{tpu_custom_call.1} parent=27 // pred_fallthru
          _
        %s191 = sand.u32 %s77, 1
        %s192 = scalar_lea.sflag [#allocation7], %s191
        %s193 = sand.u32 %s77, 1
        %s194 = smul.addr %s193, 1024
        %s195 = scalar_lea.vmem [#allocation6], %s194
        // Predicated region
        $region33: #{tpu_custom_call.1} parent=27 // pred_check
          %p196 = pneg %p90
        $region34: #{tpu_custom_call.1} parent=27 // pred_check_branch
          %198 = sbr.rel (%p196) target = $region36
        $region35: #{tpu_custom_call.1} parent=27 // pred_region
          %199 = dma.done %s192, 16384
        $region36: #{tpu_custom_call.1} parent=27 // pred_fallthru
          _
        %p200 = pneg %p62
        %p201 = pneg %p59
        %s202 = sand.u32 %s77, 1
        %s203 = scalar_lea.sflag [#allocation7], %s202
        %s204 = sand.u32 %s77, 1
        %s205 = smul.addr %s204, 1024
        %s206 = scalar_lea.vmem [#allocation6], %s205
        %p207 = pneg %p90
        %p208 = pneg %p87
        %p209 = pneg %p118
        %p210 = pneg %p115
        %s211 = sand.u32 %s105, 1
        %s212 = scalar_lea.sflag [#allocation5], %s211
        %s213 = sand.u32 %s105, 1
        %s214 = smul.addr %s213, 64
        %s215 = scalar_lea.vmem [#allocation8], %s214
        %s216 = smul.u32 4, %s25
        %s217 = smul.u32 4, %s27
        %s218 = smul.u32 64, %s27
        %s219 = smul.u32 2, %s26
        %s220 = smul.u32 4, %s25
        %s221 = smul.u32 2, %s26
        %p222 = scmp.eq.s32.totalorder %s27, 0
        // Predicated region
        $region37: #{tpu_custom_call.1} parent=27 // pred_check
          %p223 = pneg %p222
        $region38: #{tpu_custom_call.1} parent=27 // pred_check_branch
          %225 = sbr.rel (%p223) target = $region40
        $region39: #{tpu_custom_call.1} parent=27 // pred_region
          %226 = vst [vmem:[#allocation2] sm:$0xff] 0.0
          %227 = vst [vmem:[#allocation2 + $0x8] sm:$0xff] 0.0
          %228 = vst [vmem:[#allocation2 + $0x10] sm:$0xff] 0.0
          %229 = vst [vmem:[#allocation2 + $0x18] sm:$0xff] 0.0
          %230 = vst [vmem:[#allocation2 + $0x20] sm:$0xff] 0.0
          %231 = vst [vmem:[#allocation2 + $0x28] sm:$0xff] 0.0
          %232 = vst [vmem:[#allocation2 + $0x30] sm:$0xff] 0.0
          %233 = vst [vmem:[#allocation2 + $0x38] sm:$0xff] 0.0
        $region40: #{tpu_custom_call.1} parent=27 // pred_fallthru
          _
        %v234 = vld [vmem:[#allocation2] sm:$0xff]
        %v235 = vld [vmem:[#allocation2 + $0x8] sm:$0xff]
        %v236 = vld [vmem:[#allocation2 + $0x10] sm:$0xff]
        %v237 = vld [vmem:[#allocation2 + $0x18] sm:$0xff]
        %v238 = vld [vmem:[#allocation2 + $0x20] sm:$0xff]
        %v239 = vld [vmem:[#allocation2 + $0x28] sm:$0xff]
        %v240 = vld [vmem:[#allocation2 + $0x30] sm:$0xff]
        %v241 = vld [vmem:[#allocation2 + $0x38] sm:$0xff]
        %v242 = vld [vmem:[#allocation3] sm:$0xff]
        %v243 = vld [vmem:[#allocation3 + $0x8] sm:$0xff]
        %v244 = vld [vmem:[#allocation3 + $0x10] sm:$0xff]
        %v245 = vld [vmem:[#allocation3 + $0x18] sm:$0xff]
        %v246 = vld [vmem:[#allocation3 + $0x20] sm:$0xff]
        %v247 = vld [vmem:[#allocation3 + $0x28] sm:$0xff]
        %v248 = vld [vmem:[#allocation3 + $0x30] sm:$0xff]
        %v249 = vld [vmem:[#allocation3 + $0x38] sm:$0xff]
        %v250 = vld [vmem:[#allocation3 + $0x40] sm:$0xff]
        %v251 = vld [vmem:[#allocation3 + $0x48] sm:$0xff]
        %v252 = vld [vmem:[#allocation3 + $0x50] sm:$0xff]
        %v253 = vld [vmem:[#allocation3 + $0x58] sm:$0xff]
        %v254 = vld [vmem:[#allocation3 + $0x60] sm:$0xff]
        %v255 = vld [vmem:[#allocation3 + $0x68] sm:$0xff]
        %v256 = vld [vmem:[#allocation3 + $0x70] sm:$0xff]
        %v257 = vld [vmem:[#allocation3 + $0x78] sm:$0xff]
        %v258 = vld [vmem:[%s195] sm:$0xff]
        %v259 = vld [vmem:[%s195 + $0x8] sm:$0xff]
        %v260 = vld [vmem:[%s195 + $0x10] sm:$0xff]
        %v261 = vld [vmem:[%s195 + $0x18] sm:$0xff]
        %v262 = vld [vmem:[%s195 + $0x20] sm:$0xff]
        %v263 = vld [vmem:[%s195 + $0x28] sm:$0xff]
        %v264 = vld [vmem:[%s195 + $0x30] sm:$0xff]
        %v265 = vld [vmem:[%s195 + $0x38] sm:$0xff]
        %v266 = vld [vmem:[%s195 + $0x40] sm:$0xff]
        %v267 = vld [vmem:[%s195 + $0x48] sm:$0xff]
        %v268 = vld [vmem:[%s195 + $0x50] sm:$0xff]
        %v269 = vld [vmem:[%s195 + $0x58] sm:$0xff]
        %v270 = vld [vmem:[%s195 + $0x60] sm:$0xff]
        %v271 = vld [vmem:[%s195 + $0x68] sm:$0xff]
        %v272 = vld [vmem:[%s195 + $0x70] sm:$0xff]
        %v273 = vld [vmem:[%s195 + $0x78] sm:$0xff]
        %v274 = vld [vmem:[%s195 + $0x80] sm:$0xff]
        %v275 = vld [vmem:[%s195 + $0x88] sm:$0xff]
        %v276 = vld [vmem:[%s195 + $0x90] sm:$0xff]
        %v277 = vld [vmem:[%s195 + $0x98] sm:$0xff]
        %v278 = vld [vmem:[%s195 + $0xa0] sm:$0xff]
        %v279 = vld [vmem:[%s195 + $0xa8] sm:$0xff]
        %v280 = vld [vmem:[%s195 + $0xb0] sm:$0xff]
        %v281 = vld [vmem:[%s195 + $0xb8] sm:$0xff]
        %v282 = vld [vmem:[%s195 + $0xc0] sm:$0xff]
        %v283 = vld [vmem:[%s195 + $0xc8] sm:$0xff]
        %v284 = vld [vmem:[%s195 + $0xd0] sm:$0xff]
        %v285 = vld [vmem:[%s195 + $0xd8] sm:$0xff]
        %v286 = vld [vmem:[%s195 + $0xe0] sm:$0xff]
        %v287 = vld [vmem:[%s195 + $0xe8] sm:$0xff]
        %v288 = vld [vmem:[%s195 + $0xf0] sm:$0xff]
        %v289 = vld [vmem:[%s195 + $0xf8] sm:$0xff]
        %v290 = vld [vmem:[%s195 + $0x100] sm:$0xff]
        %v291 = vld [vmem:[%s195 + $0x108] sm:$0xff]
        %v292 = vld [vmem:[%s195 + $0x110] sm:$0xff]
        %v293 = vld [vmem:[%s195 + $0x118] sm:$0xff]
        %v294 = vld [vmem:[%s195 + $0x120] sm:$0xff]
        %v295 = vld [vmem:[%s195 + $0x128] sm:$0xff]
        %v296 = vld [vmem:[%s195 + $0x130] sm:$0xff]
        %v297 = vld [vmem:[%s195 + $0x138] sm:$0xff]
        %v298 = vld [vmem:[%s195 + $0x140] sm:$0xff]
        %v299 = vld [vmem:[%s195 + $0x148] sm:$0xff]
        %v300 = vld [vmem:[%s195 + $0x150] sm:$0xff]
        %v301 = vld [vmem:[%s195 + $0x158] sm:$0xff]
        %v302 = vld [vmem:[%s195 + $0x160] sm:$0xff]
        %v303 = vld [vmem:[%s195 + $0x168] sm:$0xff]
        %v304 = vld [vmem:[%s195 + $0x170] sm:$0xff]
        %v305 = vld [vmem:[%s195 + $0x178] sm:$0xff]
        %v306 = vld [vmem:[%s195 + $0x180] sm:$0xff]
        %v307 = vld [vmem:[%s195 + $0x188] sm:$0xff]
        %v308 = vld [vmem:[%s195 + $0x190] sm:$0xff]
        %v309 = vld [vmem:[%s195 + $0x198] sm:$0xff]
        %v310 = vld [vmem:[%s195 + $0x1a0] sm:$0xff]
        %v311 = vld [vmem:[%s195 + $0x1a8] sm:$0xff]
        %v312 = vld [vmem:[%s195 + $0x1b0] sm:$0xff]
        %v313 = vld [vmem:[%s195 + $0x1b8] sm:$0xff]
        %v314 = vld [vmem:[%s195 + $0x1c0] sm:$0xff]
        %v315 = vld [vmem:[%s195 + $0x1c8] sm:$0xff]
        %v316 = vld [vmem:[%s195 + $0x1d0] sm:$0xff]
        %v317 = vld [vmem:[%s195 + $0x1d8] sm:$0xff]
        %v318 = vld [vmem:[%s195 + $0x1e0] sm:$0xff]
        %v319 = vld [vmem:[%s195 + $0x1e8] sm:$0xff]
        %v320 = vld [vmem:[%s195 + $0x1f0] sm:$0xff]
        %v321 = vld [vmem:[%s195 + $0x1f8] sm:$0xff]
        %v322 = vld [vmem:[%s195 + $0x200] sm:$0xff]
        %v323 = vld [vmem:[%s195 + $0x208] sm:$0xff]
        %v324 = vld [vmem:[%s195 + $0x210] sm:$0xff]
        %v325 = vld [vmem:[%s195 + $0x218] sm:$0xff]
        %v326 = vld [vmem:[%s195 + $0x220] sm:$0xff]
        %v327 = vld [vmem:[%s195 + $0x228] sm:$0xff]
        %v328 = vld [vmem:[%s195 + $0x230] sm:$0xff]
        %v329 = vld [vmem:[%s195 + $0x238] sm:$0xff]
        %v330 = vld [vmem:[%s195 + $0x240] sm:$0xff]
        %v331 = vld [vmem:[%s195 + $0x248] sm:$0xff]
        %v332 = vld [vmem:[%s195 + $0x250] sm:$0xff]
        %v333 = vld [vmem:[%s195 + $0x258] sm:$0xff]
        %v334 = vld [vmem:[%s195 + $0x260] sm:$0xff]
        %v335 = vld [vmem:[%s195 + $0x268] sm:$0xff]
        %v336 = vld [vmem:[%s195 + $0x270] sm:$0xff]
        %v337 = vld [vmem:[%s195 + $0x278] sm:$0xff]
        %v338 = vld [vmem:[%s195 + $0x280] sm:$0xff]
        %v339 = vld [vmem:[%s195 + $0x288] sm:$0xff]
        %v340 = vld [vmem:[%s195 + $0x290] sm:$0xff]
        %v341 = vld [vmem:[%s195 + $0x298] sm:$0xff]
        %v342 = vld [vmem:[%s195 + $0x2a0] sm:$0xff]
        %v343 = vld [vmem:[%s195 + $0x2a8] sm:$0xff]
        %v344 = vld [vmem:[%s195 + $0x2b0] sm:$0xff]
        %v345 = vld [vmem:[%s195 + $0x2b8] sm:$0xff]
        %v346 = vld [vmem:[%s195 + $0x2c0] sm:$0xff]
        %v347 = vld [vmem:[%s195 + $0x2c8] sm:$0xff]
        %v348 = vld [vmem:[%s195 + $0x2d0] sm:$0xff]
        %v349 = vld [vmem:[%s195 + $0x2d8] sm:$0xff]
        %v350 = vld [vmem:[%s195 + $0x2e0] sm:$0xff]
        %v351 = vld [vmem:[%s195 + $0x2e8] sm:$0xff]
        %v352 = vld [vmem:[%s195 + $0x2f0] sm:$0xff]
        %v353 = vld [vmem:[%s195 + $0x2f8] sm:$0xff]
        %v354 = vld [vmem:[%s195 + $0x300] sm:$0xff]
        %v355 = vld [vmem:[%s195 + $0x308] sm:$0xff]
        %v356 = vld [vmem:[%s195 + $0x310] sm:$0xff]
        %v357 = vld [vmem:[%s195 + $0x318] sm:$0xff]
        %v358 = vld [vmem:[%s195 + $0x320] sm:$0xff]
        %v359 = vld [vmem:[%s195 + $0x328] sm:$0xff]
        %v360 = vld [vmem:[%s195 + $0x330] sm:$0xff]
        %v361 = vld [vmem:[%s195 + $0x338] sm:$0xff]
        %v362 = vld [vmem:[%s195 + $0x340] sm:$0xff]
        %v363 = vld [vmem:[%s195 + $0x348] sm:$0xff]
        %v364 = vld [vmem:[%s195 + $0x350] sm:$0xff]
        %v365 = vld [vmem:[%s195 + $0x358] sm:$0xff]
        %v366 = vld [vmem:[%s195 + $0x360] sm:$0xff]
        %v367 = vld [vmem:[%s195 + $0x368] sm:$0xff]
        %v368 = vld [vmem:[%s195 + $0x370] sm:$0xff]
        %v369 = vld [vmem:[%s195 + $0x378] sm:$0xff]
        %v370 = vld [vmem:[%s195 + $0x380] sm:$0xff]
        %v371 = vld [vmem:[%s195 + $0x388] sm:$0xff]
        %v372 = vld [vmem:[%s195 + $0x390] sm:$0xff]
        %v373 = vld [vmem:[%s195 + $0x398] sm:$0xff]
        %v374 = vld [vmem:[%s195 + $0x3a0] sm:$0xff]
        %v375 = vld [vmem:[%s195 + $0x3a8] sm:$0xff]
        %v376 = vld [vmem:[%s195 + $0x3b0] sm:$0xff]
        %v377 = vld [vmem:[%s195 + $0x3b8] sm:$0xff]
        %v378 = vld [vmem:[%s195 + $0x3c0] sm:$0xff]
        %v379 = vld [vmem:[%s195 + $0x3c8] sm:$0xff]
        %v380 = vld [vmem:[%s195 + $0x3d0] sm:$0xff]
        %v381 = vld [vmem:[%s195 + $0x3d8] sm:$0xff]
        %v382 = vld [vmem:[%s195 + $0x3e0] sm:$0xff]
        %v383 = vld [vmem:[%s195 + $0x3e8] sm:$0xff]
        %v384 = vld [vmem:[%s195 + $0x3f0] sm:$0xff]
        %v385 = vld [vmem:[%s195 + $0x3f8] sm:$0xff]
        %386 = vmatprep.subr.mxu0 %v289
        %387 = vmatpush1.msra.mxu0 %v288
        %388 = vmatprep.subr.mxu0 %v287
        %389 = vmatpush1.msra.mxu0 %v286
        %390 = vmatprep.subr.mxu0 %v285
        %391 = vmatpush1.msra.mxu0 %v284
        %392 = vmatprep.subr.mxu0 %v283
        %393 = vmatpush1.msra.mxu0 %v282
        %394 = vmatprep.subr.mxu0 %v281
        %395 = vmatpush1.msra.mxu0 %v280
        %396 = vmatprep.subr.mxu0 %v279
        %397 = vmatpush1.msra.mxu0 %v278
        %398 = vmatprep.subr.mxu0 %v277
        %399 = vmatpush1.msra.mxu0 %v276
        %400 = vmatprep.subr.mxu0 %v275
        %401 = vmatpush1.msra.mxu0 %v274
        %402 = vmatprep.subr.mxu0 %v273
        %403 = vmatpush1.msra.mxu0 %v272
        %404 = vmatprep.subr.mxu0 %v271
        %405 = vmatpush1.msra.mxu0 %v270
        %406 = vmatprep.subr.mxu0 %v269
        %407 = vmatpush1.msra.mxu0 %v268
        %408 = vmatprep.subr.mxu0 %v267
        %409 = vmatpush1.msra.mxu0 %v266
        %410 = vmatprep.subr.mxu0 %v265
        %411 = vmatpush1.msra.mxu0 %v264
        %412 = vmatprep.subr.mxu0 %v263
        %413 = vmatpush1.msra.mxu0 %v262
        %414 = vmatprep.subr.mxu0 %v261
        %415 = vmatpush1.msra.mxu0 %v260
        %416 = vmatprep.subr.mxu0 %v259
        %417 = vmatpush1.msra.mxu0 %v258
        %418 = vmatprep.subr.mxu0 %v321
        %419 = vmatpush2.msra.mxu0 %v320
        %420 = vmatprep.subr.mxu0 %v319
        %421 = vmatpush2.msra.mxu0 %v318
        %422 = vmatprep.subr.mxu0 %v317
        %423 = vmatpush2.msra.mxu0 %v316
        %424 = vmatprep.subr.mxu0 %v315
        %425 = vmatpush2.msra.mxu0 %v314
        %426 = vmatprep.subr.mxu0 %v313
        %427 = vmatpush2.msra.mxu0 %v312
        %428 = vmatprep.subr.mxu0 %v311
        %429 = vmatpush2.msra.mxu0 %v310
        %430 = vmatprep.subr.mxu0 %v309
        %431 = vmatpush2.msra.mxu0 %v308
        %432 = vmatprep.subr.mxu0 %v307
        %433 = vmatpush2.msra.mxu0 %v306
        %434 = vmatprep.subr.mxu0 %v305
        %435 = vmatpush2.msra.mxu0 %v304
        %436 = vmatprep.subr.mxu0 %v303
        %437 = vmatpush2.msra.mxu0 %v302
        %438 = vmatprep.subr.mxu0 %v301
        %439 = vmatpush2.msra.mxu0 %v300
        %440 = vmatprep.subr.mxu0 %v299
        %441 = vmatpush2.msra.mxu0 %v298
        %442 = vmatprep.subr.mxu0 %v297
        %443 = vmatpush2.msra.mxu0 %v296
        %444 = vmatprep.subr.mxu0 %v295
        %445 = vmatpush2.msra.mxu0 %v294
        %446 = vmatprep.subr.mxu0 %v293
        %447 = vmatpush2.msra.mxu0 %v292
        %448 = vmatprep.subr.mxu0 %v291
        %449 = vmatpush2.msra.mxu0 %v290
        %450 = vmatprep.mubr.f32.mxu0 %v243
        %451 = vmatmul.mubr.f32.gmra.mxu0 %v242
        %v452 = vpop.f32.mrf.mxu0
        %v453 = vadd.f32 0.0, %v452
        %v454 = vpop.f32.mrf.mxu0
        %v455 = vadd.f32 0.0, %v454
        %456 = vmatprep.mubr.f32.mxu0 %v247
        %457 = vmatmul.mubr.f32.gmra.mxu0 %v246
        %v458 = vpop.f32.mrf.mxu0
        %v459 = vadd.f32 0.0, %v458
        %v460 = vpop.f32.mrf.mxu0
        %v461 = vadd.f32 0.0, %v460
        %462 = vmatprep.mubr.f32.mxu0 %v251
        %463 = vmatmul.mubr.f32.gmra.mxu0 %v250
        %v464 = vpop.f32.mrf.mxu0
        %v465 = vadd.f32 0.0, %v464
        %v466 = vpop.f32.mrf.mxu0
        %v467 = vadd.f32 0.0, %v466
        %468 = vmatprep.mubr.f32.mxu0 %v255
        %469 = vmatmul.mubr.f32.gmra.mxu0 %v254
        %v470 = vpop.f32.mrf.mxu0
        %v471 = vadd.f32 0.0, %v470
        %v472 = vpop.f32.mrf.mxu0
        %v473 = vadd.f32 0.0, %v472
        %474 = vdwg.mxu0
        %475 = vmatprep.subr.mxu0 %v353
        %476 = vmatpush1.msra.mxu0 %v352
        %477 = vmatprep.subr.mxu0 %v351
        %478 = vmatpush1.msra.mxu0 %v350
        %479 = vmatprep.subr.mxu0 %v349
        %480 = vmatpush1.msra.mxu0 %v348
        %481 = vmatprep.subr.mxu0 %v347
        %482 = vmatpush1.msra.mxu0 %v346
        %483 = vmatprep.subr.mxu0 %v345
        %484 = vmatpush1.msra.mxu0 %v344
        %485 = vmatprep.subr.mxu0 %v343
        %486 = vmatpush1.msra.mxu0 %v342
        %487 = vmatprep.subr.mxu0 %v341
        %488 = vmatpush1.msra.mxu0 %v340
        %489 = vmatprep.subr.mxu0 %v339
        %490 = vmatpush1.msra.mxu0 %v338
        %491 = vmatprep.subr.mxu0 %v337
        %492 = vmatpush1.msra.mxu0 %v336
        %493 = vmatprep.subr.mxu0 %v335
        %494 = vmatpush1.msra.mxu0 %v334
        %495 = vmatprep.subr.mxu0 %v333
        %496 = vmatpush1.msra.mxu0 %v332
        %497 = vmatprep.subr.mxu0 %v331
        %498 = vmatpush1.msra.mxu0 %v330
        %499 = vmatprep.subr.mxu0 %v329
        %500 = vmatpush1.msra.mxu0 %v328
        %501 = vmatprep.subr.mxu0 %v327
        %502 = vmatpush1.msra.mxu0 %v326
        %503 = vmatprep.subr.mxu0 %v325
        %504 = vmatpush1.msra.mxu0 %v324
        %505 = vmatprep.subr.mxu0 %v323
        %506 = vmatpush1.msra.mxu0 %v322
        %507 = vmatprep.subr.mxu0 %v385
        %508 = vmatpush2.msra.mxu0 %v384
        %509 = vmatprep.subr.mxu0 %v383
        %510 = vmatpush2.msra.mxu0 %v382
        %511 = vmatprep.subr.mxu0 %v381
        %512 = vmatpush2.msra.mxu0 %v380
        %513 = vmatprep.subr.mxu0 %v379
        %514 = vmatpush2.msra.mxu0 %v378
        %515 = vmatprep.subr.mxu0 %v377
        %516 = vmatpush2.msra.mxu0 %v376
        %517 = vmatprep.subr.mxu0 %v375
        %518 = vmatpush2.msra.mxu0 %v374
        %519 = vmatprep.subr.mxu0 %v373
        %520 = vmatpush2.msra.mxu0 %v372
        %521 = vmatprep.subr.mxu0 %v371
        %522 = vmatpush2.msra.mxu0 %v370
        %523 = vmatprep.subr.mxu0 %v369
        %524 = vmatpush2.msra.mxu0 %v368
        %525 = vmatprep.subr.mxu0 %v367
        %526 = vmatpush2.msra.mxu0 %v366
        %527 = vmatprep.subr.mxu0 %v365
        %528 = vmatpush2.msra.mxu0 %v364
        %529 = vmatprep.subr.mxu0 %v363
        %530 = vmatpush2.msra.mxu0 %v362
        %531 = vmatprep.subr.mxu0 %v361
        %532 = vmatpush2.msra.mxu0 %v360
        %533 = vmatprep.subr.mxu0 %v359
        %534 = vmatpush2.msra.mxu0 %v358
        %535 = vmatprep.subr.mxu0 %v357
        %536 = vmatpush2.msra.mxu0 %v356
        %537 = vmatprep.subr.mxu0 %v355
        %538 = vmatpush2.msra.mxu0 %v354
        %539 = vmatprep.mubr.f32.mxu0 %v245
        %540 = vmatmul.mubr.f32.gmra.mxu0 %v244
        %v541 = vpop.f32.mrf.mxu0
        %v542 = vadd.f32 %v453, %v541
        %v543 = vpop.f32.mrf.mxu0
        %v544 = vadd.f32 %v455, %v543
        %545 = vmatprep.mubr.f32.mxu0 %v249
        %546 = vmatmul.mubr.f32.gmra.mxu0 %v248
        %v547 = vpop.f32.mrf.mxu0
        %v548 = vadd.f32 %v459, %v547
        %v549 = vpop.f32.mrf.mxu0
        %v550 = vadd.f32 %v461, %v549
        %551 = vmatprep.mubr.f32.mxu0 %v253
        %552 = vmatmul.mubr.f32.gmra.mxu0 %v252
        %v553 = vpop.f32.mrf.mxu0
        %v554 = vadd.f32 %v465, %v553
        %v555 = vpop.f32.mrf.mxu0
        %v556 = vadd.f32 %v467, %v555
        %557 = vmatprep.mubr.f32.mxu0 %v257
        %558 = vmatmul.mubr.f32.gmra.mxu0 %v256
        %v559 = vpop.f32.mrf.mxu0
        %v560 = vadd.f32 %v471, %v559
        %v561 = vpop.f32.mrf.mxu0
        %v562 = vadd.f32 %v473, %v561
        %563 = vdwg.mxu0
        %v564 = vadd.f32 %v234, %v542
        %v565 = vadd.f32 %v235, %v544
        %v566 = vadd.f32 %v236, %v548
        %v567 = vadd.f32 %v237, %v550
        %v568 = vadd.f32 %v238, %v554
        %v569 = vadd.f32 %v239, %v556
        %v570 = vadd.f32 %v240, %v560
        %v571 = vadd.f32 %v241, %v562
        %572 = vst [vmem:[#allocation2] sm:$0xff] %v564
        %573 = vst [vmem:[#allocation2 + $0x8] sm:$0xff] %v565
        %574 = vst [vmem:[#allocation2 + $0x10] sm:$0xff] %v566
        %575 = vst [vmem:[#allocation2 + $0x18] sm:$0xff] %v567
        %576 = vst [vmem:[#allocation2 + $0x20] sm:$0xff] %v568
        %577 = vst [vmem:[#allocation2 + $0x28] sm:$0xff] %v569
        %578 = vst [vmem:[#allocation2 + $0x30] sm:$0xff] %v570
        %579 = vst [vmem:[#allocation2 + $0x38] sm:$0xff] %v571
        // Predicated region
        $region41: #{tpu_custom_call.1} parent=27 // pred_check
          %p580 = pneg %p222
        $region42: #{tpu_custom_call.1} parent=27 // pred_check_branch
          %582 = sbr.rel (%p580) target = $region44
        $region43: #{tpu_custom_call.1} parent=27 // pred_region
          %v583 = vld [vmem:[#allocation2] sm:$0xff]
          %v584 = vld [vmem:[#allocation2 + $0x8] sm:$0xff]
          %v585 = vld [vmem:[#allocation2 + $0x10] sm:$0xff]
          %v586 = vld [vmem:[#allocation2 + $0x18] sm:$0xff]
          %v587 = vld [vmem:[#allocation2 + $0x20] sm:$0xff]
          %v588 = vld [vmem:[#allocation2 + $0x28] sm:$0xff]
          %v589 = vld [vmem:[#allocation2 + $0x30] sm:$0xff]
          %v590 = vld [vmem:[#allocation2 + $0x38] sm:$0xff]
          %591 = vst [vmem:[%s215] sm:$0xff] %v583
          %592 = vst [vmem:[%s215 + $0x8] sm:$0xff] %v584
          %593 = vst [vmem:[%s215 + $0x10] sm:$0xff] %v585
          %594 = vst [vmem:[%s215 + $0x18] sm:$0xff] %v586
          %595 = vst [vmem:[%s215 + $0x20] sm:$0xff] %v587
          %596 = vst [vmem:[%s215 + $0x28] sm:$0xff] %v588
          %597 = vst [vmem:[%s215 + $0x30] sm:$0xff] %v589
          %598 = vst [vmem:[%s215 + $0x38] sm:$0xff] %v590
        $region44: #{tpu_custom_call.1} parent=27 // pred_fallthru
          _
        %s599 = sand.u32 %s105, 1
        %s600 = scalar_lea.sflag [#allocation5], %s599
        %s601 = sand.u32 %s105, 1
        %s602 = smul.addr %s601, 64
        %s603 = scalar_lea.vmem [#allocation8], %s602
        // Predicated region
        $region45: #{tpu_custom_call.1} parent=27 // pred_check
          %p604 = pneg %p115
        $region46: #{tpu_custom_call.1} parent=27 // pred_check_branch
          %606 = sbr.rel (%p604) target = $region48
        $region47: #{tpu_custom_call.1} parent=27 // pred_region
          %s607 = smul.u32 4, %s25
          %s608 = smul.u32 2, %s26
          %s610 = ssub.s32 1024, 1024
          %611 = vsyncadd %s600, %s610
          %s612 = smul.addr %s607, 4
          %s613 = sadd.s32 %s608, %s612
          %s614 = smul.addr %s613, 128
          %s615 = scalar_lea.hbm %s2, %s614
          %s616 = sshll.u32 %s603, 4
          %s617 = int_to_ptr.vmem [resolvable:$true] %s616
          %622 = dma.vmem_to_hbm [thread:$0]  %s617, 1024, %s615, %s600, 256, 512, 16
        $region48: #{tpu_custom_call.1} parent=27 // pred_fallthru
          _
      $region28: #{tpu_custom_call.1} parent=5 // pred_fallthru
        _
      %p623 = scmp.le.s32.totalorder 2, %s15
      // Predicated region
      $region49: #{tpu_custom_call.1} parent=5 // pred_check
        %p624 = pneg %p623
      $region50: #{tpu_custom_call.1} parent=5 // pred_check_branch
        %626 = sbr.rel (%p624) target = $region52
      $region51: #{tpu_custom_call.1} parent=5 // pred_region
        %s627 = ssub.s32 %s15, 2
        // Predicated region
        $region53: #{tpu_custom_call.1} parent=51 // pred_check
          %p628 = pneg %p121
        $region54: #{tpu_custom_call.1} parent=51 // pred_check_branch
          %630 = sbr.rel (%p628) target = $region56
        $region55: #{tpu_custom_call.1} parent=51 // pred_region
          %s631 = sand.u32 %s106, 1
          %s632 = scalar_lea.sflag [#allocation5], %s631
          %s633 = sand.u32 %s106, 1
          %s634 = smul.addr %s633, 64
          %s635 = scalar_lea.vmem [#allocation8], %s634
          %636 = dma.done %s632, 1024
        $region56: #{tpu_custom_call.1} parent=51 // pred_fallthru
          _
      $region52: #{tpu_custom_call.1} parent=5 // pred_fallthru
        _
    $region6: #{tpu_custom_call.1} parent=1 // loop_footer
      %s19 = sadd.s32 1, %s15
    $region7: #{tpu_custom_call.1} parent=1 // loop_footer_branch
      %14 = sbr.rel target = $region3
    $region8: #{tpu_custom_call.1} parent=1 // loop_exit
      _
    %637 = vsyncpa [#allocation4], 1
    %s638 = scalar_lea.sflag [#allocation4], 1
    %639 = vsyncpa %s638, 1
    %640 = vsyncpa [#allocation7], 1
    %s641 = scalar_lea.sflag [#allocation7], 1
    %642 = vsyncpa %s641, 1
    %643 = vsyncpa [#allocation5], 1
    %s644 = scalar_lea.sflag [#allocation5], 1
    %645 = vsyncpa %s644, 1

</llo_original>
